<compile_context>
chip_gen: v6e
topology: v6e:2x2x1
jax: 0.10.0
libtpu: 0.0.40
codegen_flags: <defaults>
</compile_context>

<pallas_src>
import jax
import jax.numpy as jnp
from jax.experimental import pallas as pl
from jax.experimental.pallas import tpu as pltpu


def _identity_kernel(x_ref, o_ref):
    # Straight VMEM tile copy.
    o_ref[...] = x_ref[...]


def identity_forward(x):
    """Pallas identity: returns an array equal to x (same shape / dtype)."""
    orig_shape = x.shape
    n = x.size
    LANES = 128

    # Lane-dense 2-D view: last dim = 128 whenever possible so loads/stores are
    # full-width vld/vst (per perf feedback: avoid masked partial stores).
    if n % LANES == 0:
        rows, cols = n // LANES, LANES
    else:
        rows, cols = 1, n
    x2 = x.reshape(rows, cols)

    # Pick the largest row-block (multiple of 8 sublanes) that divides `rows` and keeps
    # a single buffer around ~2 MiB; double-buffering of in+out then stays far under the
    # scoped-VMEM default on every generation (incl. v7x's smaller VMEM).
    block_rows = rows
    if rows > 8 and rows % 8 == 0:
        itemsize = jnp.dtype(x.dtype).itemsize
        target = max(8, min(rows, (2 << 20) // max(1, cols * itemsize)))
        br = (target // 8) * 8
        while br > 8 and rows % br != 0:
            br -= 8
        if br >= 8 and rows % br == 0:
            block_rows = br

    grid = (rows // block_rows,)
    out2 = pl.pallas_call(
        _identity_kernel,
        out_shape=jax.ShapeDtypeStruct((rows, cols), x.dtype),
        grid=grid,
        in_specs=[pl.BlockSpec((block_rows, cols), lambda i: (i, 0))],
        out_specs=pl.BlockSpec((block_rows, cols), lambda i: (i, 0)),
        compiler_params=pltpu.CompilerParams(dimension_semantics=("parallel",)),
    )(x2)
    return out2.reshape(orig_shape)


@jax.jit
def identity_layer(x):
    return identity_forward(x)


if __name__ == "__main__":
    key = jax.random.PRNGKey(0)
    B, C, H, W = 2, 4, 16, 16
    x = jax.random.normal(key, (B, C, H, W), jnp.float32)

    out = identity_layer(x)
    jax.block_until_ready(out)

    assert out.shape == x.shape and out.dtype == x.dtype
    assert bool(jnp.all(out == x))          # exact identity
    assert bool(jnp.all(jnp.isfinite(out)))
    print("KERNEL_OK")
</pallas_src>

<mosaic_0001>
module attributes {stable_mosaic.version = 11 : i64} {
  func.func @_identity_kernel(%arg0: i32, %arg1: memref<16x128xf32, #tpu.memory_space<vmem>>, %arg2: memref<16x128xf32, #tpu.memory_space<vmem>>) attributes {dimension_semantics = [#tpu.dimension_semantics<parallel>], iteration_bounds = array<i64: 1>, scalar_prefetch = 0 : i64, scratch_operands = 0 : i64, tpu.core_type = #tpu.core_type<tc>, window_params = [{transform_indices = @transform_0, window_bounds = array<i64: 16, 128>}, {transform_indices = @transform_1, window_bounds = array<i64: 16, 128>}]} {
    %c0 = arith.constant 0 : index
    %c0_0 = arith.constant 0 : index
    %0 = vector.load %arg1[%c0, %c0_0] : memref<16x128xf32, #tpu.memory_space<vmem>>, vector<16x128xf32>
    %c0_1 = arith.constant 0 : index
    %c0_2 = arith.constant 0 : index
    %1 = vector.load %arg2[%c0_1, %c0_2] : memref<16x128xf32, #tpu.memory_space<vmem>>, vector<16x128xf32>
    tpu.vector_store %arg2[%c0_1, %c0_2], %0 {strides = array<i32>} : memref<16x128xf32, #tpu.memory_space<vmem>>, vector<16x128xf32>,
    return
  }
  func.func @transform_0(%arg0: i32) -> (i32, i32) {
    %c0_i32 = arith.constant 0 : i32
    %c0_i32_0 = arith.constant 0 : i32
    return %arg0, %c0_i32 : i32, i32
  }
  func.func @transform_1(%arg0: i32) -> (i32, i32) {
    %c0_i32 = arith.constant 0 : i32
    %c0_i32_0 = arith.constant 0 : i32
    return %arg0, %c0_i32 : i32, i32
  }
}

</mosaic_0001>

<llo_original>
// kernel: identity_layer.1
$region0: #{identity_layer.1}
  #allocation0 [shape = 'u32[]', space=smem, size = 0x4, offset = 0x4, fixed_abs, tag = 'smem constant byte address 0x4 - core index']
  #allocation1 [shape = 'u32[144,128]{1,0:T(1,128)}', space=vmem, size = 0x12000, scoped, tag = 'internal scratch']
  %s0 = inlined_call_operand.vmem [shape: f32[16,128], index: 0, kind: input, shape index: {}]
  %s1 = inlined_call_operand.vmem [shape: f32[16,128], index: 1, kind: output, shape index: {}]
  %s2 = sld [smem:[#allocation0]]
  $region14: #{identity_layer.1} parent=0
    _
  %s4 = ssub.s32 1, %s2
  %s5 = scalar_select 0, %s4, %s2
  // Predicated region
  $region2: #{identity_layer.1} parent=0 // pred_check
    _
  $region3: #{identity_layer.1} parent=0 // pred_check_branch
    %7 = sbr.rel (0) target = $region5
  $region4: #{identity_layer.1} parent=0 // pred_region
    _
  $region5: #{identity_layer.1} parent=0 // pred_fallthru
    _
  %v8 = vld [vmem:[%s0] sm:$0xff]
  %v9 = vld [vmem:[%s0 + $0x8] sm:$0xff]
  %10 = vst [vmem:[%s1] sm:$0xff] %v8
  %11 = vst [vmem:[%s1 + $0x8] sm:$0xff] %v9
  // Predicated region
  $region6: #{identity_layer.1} parent=0 // pred_check
    _
  $region7: #{identity_layer.1} parent=0 // pred_check_branch
    %13 = sbr.rel (0) target = $region9
  $region8: #{identity_layer.1} parent=0 // pred_region
    _
  $region9: #{identity_layer.1} parent=0 // pred_fallthru
    _
  // Predicated region
  $region10: #{identity_layer.1} parent=0 // pred_check
    _
  $region11: #{identity_layer.1} parent=0 // pred_check_branch
    %15 = sbr.rel (0) target = $region13
  $region12: #{identity_layer.1} parent=0 // pred_region
    _
  $region13: #{identity_layer.1} parent=0 // pred_fallthru
    _

</llo_original>
